<compile_context>
chip_gen: v5e
topology: v5e:2x2
jax: 0.10.0
libtpu: 0.0.40
codegen_flags: <defaults>
</compile_context>

<pallas_src>
import functools
import math

import jax
import jax.numpy as jnp
from jax.experimental import pallas as pl
from jax.experimental.pallas import tpu as pltpu


# ------------------------------ hw / tiling helpers ------------------------------


def _default_vmem_limit():
    """Generation-aware scoped-VMEM budget: ~96 MiB on v5e/v6e (128 MiB physical),
    ~44 MiB on v7x (64 MiB per TC).  Conservative fallback if the query fails."""
    try:
        cap = int(pltpu.get_tpu_info().vmem_capacity_bytes)
    except Exception:
        cap = 64 * 1024 * 1024
    if cap <= 64 * 1024 * 1024:
        return 44 * 1024 * 1024
    return 96 * 1024 * 1024


_VMEM_LIMIT = _default_vmem_limit()


def _tile(dim, preferred):
    """Use `preferred` if it evenly divides dim, else fall back to the full dim
    (full-dim blocks always satisfy the (8,128) BlockSpec constraint)."""
    return preferred if dim % preferred == 0 else dim


def _tile_k(K):
    """Keep the contraction dim whole up to 1024; above that tile at 1024."""
    return K if K <= 1024 else _tile(K, 1024)


def _heads_per_block(num_heads, dh):
    """Smallest head group whose width is a multiple of 128 lanes (lane-dense
    attention output); fall back to all heads (block == full H)."""
    for cand in range(1, num_heads + 1):
        if num_heads % cand == 0 and (cand * dh) % 128 == 0:
            return cand
    return num_heads


# ----------------------------- dense (tiled MXU) ----------------------------


def _dense_kernel(*refs, activation, fuse_ln, ln_eps):
    if fuse_ln:
        x_ref, w_ref, b_ref, r_ref, g_ref, bt_ref, o_ref, acc_ref = refs
    else:
        x_ref, w_ref, b_ref, o_ref, acc_ref = refs
        r_ref = g_ref = bt_ref = None

    k = pl.program_id(2)

    @pl.when(k == 0)
    def _init():
        acc_ref[...] = jnp.zeros_like(acc_ref)

    acc_ref[...] += jnp.dot(x_ref[...], w_ref[...],
                            preferred_element_type=jnp.float32)

    @pl.when(k == pl.num_programs(2) - 1)
    def _finalize():
        y = acc_ref[...] + b_ref[...].astype(jnp.float32)
        if activation == "gelu":
            # TODO(synk): HF BERT uses exact erf-GELU; tanh approximation kept for
            # robust Mosaic lowering. Epilogue stays in f32 (v5e has no bf16 VPU/EUP).
            y = 0.5 * y * (1.0 + jnp.tanh(0.7978845608028654 *
                                          (y + 0.044715 * y * y * y)))
        if fuse_ln:
            # Fused residual add + LayerNorm (requires the full H row in this tile).
            y = y + r_ref[...].astype(jnp.float32)
            mean = jnp.mean(y, axis=-1, keepdims=True)
            yc = y - mean
            var = jnp.mean(yc * yc, axis=-1, keepdims=True)
            y = (yc * jax.lax.rsqrt(var + ln_eps)
                 * g_ref[...].astype(jnp.float32)
                 + bt_ref[...].astype(jnp.float32))
        o_ref[...] = y.astype(o_ref.dtype)


def dense(x, w, b, *, activation=None, residual=None, ln_gamma=None, ln_beta=None,
          ln_eps=1e-12, out_dtype=jnp.bfloat16):
    """Tiled y = x @ w + b with optional fused GELU or fused (residual + LayerNorm)."""
    M, K = x.shape
    _, N = w.shape
    fuse_ln = ln_gamma is not None

    tm = _tile(M, 512)              # <=512 keeps the fused-LN f32 epilogue cheap on v5e
    tk = _tile_k(K)
    tn = N if (fuse_ln or N <= 1024) else _tile(N, 1024)  # LN needs the whole row
    grid = (M // tm, N // tn, K // tk)

    in_specs = [
        pl.BlockSpec((tm, tk), lambda i, j, k: (i, k)),
        pl.BlockSpec((tk, tn), lambda i, j, k: (k, j)),
        pl.BlockSpec((1, tn), lambda i, j, k: (0, j)),
    ]
    inputs = [x, w, b.reshape(1, N)]
    if fuse_ln:
        in_specs += [
            pl.BlockSpec((tm, tn), lambda i, j, k: (i, j)),
            pl.BlockSpec((1, tn), lambda i, j, k: (0, j)),
            pl.BlockSpec((1, tn), lambda i, j, k: (0, j)),
        ]
        inputs += [residual, ln_gamma.reshape(1, N), ln_beta.reshape(1, N)]

    bytes_accessed = (x.size * x.dtype.itemsize + w.size * w.dtype.itemsize
                      + M * N * jnp.dtype(out_dtype).itemsize)
    if residual is not None:
        bytes_accessed += residual.size * residual.dtype.itemsize
    cost = pl.CostEstimate(flops=2 * M * N * K,
                           transcendentals=(M * N if activation == "gelu" else 0),
                           bytes_accessed=int(bytes_accessed))

    return pl.pallas_call(
        functools.partial(_dense_kernel, activation=activation,
                          fuse_ln=fuse_ln, ln_eps=ln_eps),
        out_shape=jax.ShapeDtypeStruct((M, N), out_dtype),
        grid=grid,
        in_specs=in_specs,
        out_specs=pl.BlockSpec((tm, tn), lambda i, j, k: (i, j)),
        scratch_shapes=[pltpu.VMEM((tm, tn), jnp.float32)],
        compiler_params=pltpu.CompilerParams(
            dimension_semantics=("parallel", "parallel", "arbitrary"),
            vmem_limit_bytes=_VMEM_LIMIT),
        cost_estimate=cost,
    )(*inputs)


# ----------------------- fused Q/K/V projection (grouped) -------------------


def _qkv_kernel(x_ref, w_ref, b_ref, o_ref, acc_ref):
    # x: (tm, tk); w: (3, tk, N); b: (3, 1, N); o: (3, tm, N); acc: (3, tm, N) f32
    k = pl.program_id(1)

    @pl.when(k == 0)
    def _init():
        acc_ref[...] = jnp.zeros_like(acc_ref)

    xb = x_ref[...]            # read x once, reuse for the three projections
    for g in range(3):
        acc_ref[g] += jnp.dot(xb, w_ref[g], preferred_element_type=jnp.float32)

    @pl.when(k == pl.num_programs(1) - 1)
    def _finalize():
        o_ref[...] = (acc_ref[...] + b_ref[...].astype(jnp.float32)).astype(o_ref.dtype)


def dense_qkv(x, w3, b3, out_dtype=jnp.bfloat16):
    """Fused Q/K/V projection: w3 is (3, H, H), output is (3, M, H).
    N is untiled (full H) so x is read once per M tile and the output store is
    fully lane-dense; the grid is (M tiles, K tiles)."""
    M, K = x.shape
    G, _, N = w3.shape

    tm = _tile(M, 512)
    tk = _tile_k(K)
    grid = (M // tm, K // tk)

    cost = pl.CostEstimate(
        flops=2 * G * M * N * K, transcendentals=0,
        bytes_accessed=int(x.size * x.dtype.itemsize + w3.size * w3.dtype.itemsize
                           + G * M * N * jnp.dtype(out_dtype).itemsize))

    return pl.pallas_call(
        _qkv_kernel,
        out_shape=jax.ShapeDtypeStruct((G, M, N), out_dtype),
        grid=grid,
        in_specs=[
            pl.BlockSpec((tm, tk), lambda i, k: (i, k)),
            pl.BlockSpec((G, tk, N), lambda i, k: (0, k, 0)),
            pl.BlockSpec((G, 1, N), lambda i, k: (0, 0, 0)),
        ],
        out_specs=pl.BlockSpec((G, tm, N), lambda i, k: (0, i, 0)),
        scratch_shapes=[pltpu.VMEM((G, tm, N), jnp.float32)],
        compiler_params=pltpu.CompilerParams(
            dimension_semantics=("parallel", "arbitrary"),
            vmem_limit_bytes=_VMEM_LIMIT),
        cost_estimate=cost,
    )(x, w3, b3)


# --------------------------------- attention --------------------------------


def _attn_kernel(qkv_ref, m_ref, o_ref, *, hpb, dh, tq):
    # qkv: (3, 1, S, hpb*dh) packed Q/K/V (Q pre-scaled by 1/sqrt(dh));
    # mask: (1, 1, S) additive (0 keep, -1e9 for [PAD]); out: (1, tq, hpb*dh).
    qi = pl.program_id(2)
    q_start = pl.multiple_of(qi * tq, tq)

    mask = m_ref[0]                                     # (1, S) f32
    qb = qkv_ref[0, 0, pl.ds(q_start, tq), :]           # (tq, hb) bf16
    kb = qkv_ref[1, 0]                                  # (S,  hb) bf16
    vb = qkv_ref[2, 0]                                  # (S,  hb) bf16

    # TODO(synk): for very long sequences this should become a flash-style KV-tiled
    # online softmax; for BERT-scale S the (tq, S) logits per head fit VMEM comfortably.
    outs = []
    for h in range(hpb):
        sl = slice(h * dh, (h + 1) * dh)
        q = qb[:, sl]
        kk = kb[:, sl]
        v = vb[:, sl]
        # Contract over dh without materializing K^T (MXU consumes it directly).
        s = jax.lax.dot_general(q, kk, (((1,), (1,)), ((), ())),
                                preferred_element_type=jnp.float32)     # (tq, S)
        s = s + mask
        s = s - jnp.max(s, axis=-1, keepdims=True)
        p = jnp.exp(s)
        denom = jnp.sum(p, axis=-1, keepdims=True)                      # (tq, 1)
        pv = jnp.dot(p.astype(v.dtype), v,
                     preferred_element_type=jnp.float32)                # (tq, dh)
        # Normalize AFTER the PV matmul: (tq, dh) multiply instead of (tq, S).
        outs.append(pv * pl.reciprocal(denom, approx=True))

    # One lane-dense (tq, hpb*dh) store instead of per-head partial stores.
    o_ref[0] = jnp.concatenate(outs, axis=-1).astype(o_ref.dtype)


def attention(qkv, add_mask, num_heads, dh):
    """qkv: (3, B, S, H) packed Q/K/V; output (B, S, H) already in merged-head layout."""
    _, B, S, H = qkv.shape
    hpb = _heads_per_block(num_heads, dh)
    hb = hpb * dh
    tq = _tile(S, 256)              # query tiling keeps the logits at (tq, S)
    grid = (B, num_heads // hpb, S // tq)
    return pl.pallas_call(
        functools.partial(_attn_kernel, hpb=hpb, dh=dh, tq=tq),
        out_shape=jax.ShapeDtypeStruct((B, S, H), qkv.dtype),
        grid=grid,
        in_specs=[
            # Packed Q/K/V passed ONCE; same block across the qi axis so it stays resident.
            pl.BlockSpec((3, 1, S, hb), lambda b, j, qi: (0, b, 0, j)),
            pl.BlockSpec((1, 1, S), lambda b, j, qi: (b, 0, 0)),
        ],
        out_specs=pl.BlockSpec((1, tq, hb), lambda b, j, qi: (b, qi, j)),
        compiler_params=pltpu.CompilerParams(
            dimension_semantics=("parallel", "parallel", "parallel"),
            vmem_limit_bytes=_VMEM_LIMIT),
    )(qkv, add_mask)


# ----------------- embeddings: fused (word + pos + type) + LayerNorm --------


def _emb_ln_kernel(w_ref, pt_ref, g_ref, b_ref, o_ref, *, eps):
    # w: (1, ts, H) gathered word embeddings; pt: (ts, H) pos+type table (shared over batch).
    x = w_ref[0].astype(jnp.float32) + pt_ref[...].astype(jnp.float32)
    mean = jnp.mean(x, axis=-1, keepdims=True)
    xc = x - mean
    var = jnp.mean(xc * xc, axis=-1, keepdims=True)
    o_ref[0] = (xc * jax.lax.rsqrt(var + eps) * g_ref[...] + b_ref[...]).astype(o_ref.dtype)


def embed_layernorm(word_emb, pos_type, gamma, beta, eps=1e-12, out_dtype=jnp.bfloat16):
    """Fused embedding-sum + LayerNorm: avoids materializing the f32 (B*S, H) sum in HBM."""
    B, S, H = word_emb.shape
    ts = _tile(S, 512)
    return pl.pallas_call(
        functools.partial(_emb_ln_kernel, eps=eps),
        out_shape=jax.ShapeDtypeStruct((B, S, H), out_dtype),
        grid=(B, S // ts),
        in_specs=[
            pl.BlockSpec((1, ts, H), lambda b, s: (b, s, 0)),
            pl.BlockSpec((ts, H), lambda b, s: (s, 0)),
            pl.BlockSpec((1, H), lambda b, s: (0, 0)),
            pl.BlockSpec((1, H), lambda b, s: (0, 0)),
        ],
        out_specs=pl.BlockSpec((1, ts, H), lambda b, s: (b, s, 0)),
        compiler_params=pltpu.CompilerParams(
            dimension_semantics=("parallel", "parallel")),
    )(word_emb, pos_type, gamma.reshape(1, H), beta.reshape(1, H))


# ----------------------------- max-pool over seq -----------------------------


def _maxpool_kernel(x_ref, o_ref):
    # torch.max(hidden, dim=1)[0]: max over the sequence dim (PAD positions included,
    # matching the PyTorch reference which does not mask before the max).
    o_ref[...] = jnp.max(x_ref[...].astype(jnp.float32), axis=1)


def maxpool_seq(hidden):
    B, S, H = hidden.shape
    th = _tile(H, 512)
    return pl.pallas_call(
        _maxpool_kernel,
        out_shape=jax.ShapeDtypeStruct((B, H), jnp.float32),
        grid=(H // th,),
        in_specs=[pl.BlockSpec((B, S, th), lambda j: (0, 0, j))],
        out_specs=pl.BlockSpec((B, th), lambda j: (0, j)),
        compiler_params=pltpu.CompilerParams(dimension_semantics=("parallel",)),
    )(hidden)


# ------------------------------ Model (glue) -------------------------------


def init_params(key, vocab, max_pos, hidden, num_heads, intermediate, num_layers):
    std = 0.02

    def nrm(k, shape):
        return (jax.random.normal(k, shape, jnp.float32) * std).astype(jnp.float32)

    keys = jax.random.split(key, 3 + num_layers)
    params = {
        "word_emb": nrm(keys[0], (vocab, hidden)),
        "pos_emb": nrm(keys[1], (max_pos, hidden)),
        "type_emb": nrm(keys[2], (2, hidden)),
        "emb_ln_g": jnp.ones((hidden,), jnp.float32),
        "emb_ln_b": jnp.zeros((hidden,), jnp.float32),
        "layers": [],
    }
    for li in range(num_layers):
        lk = jax.random.split(keys[3 + li], 6)
        params["layers"].append({
            "Wq": nrm(lk[0], (hidden, hidden)), "bq": jnp.zeros((hidden,), jnp.float32),
            "Wk": nrm(lk[1], (hidden, hidden)), "bk": jnp.zeros((hidden,), jnp.float32),
            "Wv": nrm(lk[2], (hidden, hidden)), "bv": jnp.zeros((hidden,), jnp.float32),
            "Wo": nrm(lk[3], (hidden, hidden)), "bo": jnp.zeros((hidden,), jnp.float32),
            "ln1_g": jnp.ones((hidden,), jnp.float32), "ln1_b": jnp.zeros((hidden,), jnp.float32),
            "W1": nrm(lk[4], (hidden, intermediate)), "b1": jnp.zeros((intermediate,), jnp.float32),
            "W2": nrm(lk[5], (intermediate, hidden)), "b2": jnp.zeros((hidden,), jnp.float32),
            "ln2_g": jnp.ones((hidden,), jnp.float32), "ln2_b": jnp.zeros((hidden,), jnp.float32),
        })
    return params


def prepare_params(params, num_heads):
    """One-time weight prep: stack Q/K/V as (3,H,H), fold 1/sqrt(dh) into the Q
    projection (weights AND bias), and cast matmul weights to bf16 (f32 accumulation)."""
    H = params["word_emb"].shape[1]
    dh = H // num_heads
    scale = 1.0 / math.sqrt(dh)
    prepped = {
        "word_emb": params["word_emb"],
        "pos_emb": params["pos_emb"],
        "type_emb": params["type_emb"],
        "emb_ln_g": params["emb_ln_g"],
        "emb_ln_b": params["emb_ln_b"],
        "layers": [],
    }
    for lp in params["layers"]:
        w_qkv = jnp.stack([lp["Wq"] * scale, lp["Wk"], lp["Wv"]], axis=0)              # (3, H, H)
        b_qkv = jnp.stack([lp["bq"] * scale, lp["bk"], lp["bv"]], axis=0)[:, None, :]  # (3, 1, H)
        prepped["layers"].append({
            "w_qkv": w_qkv.astype(jnp.bfloat16),
            "b_qkv": b_qkv.astype(jnp.float32),
            "Wo": lp["Wo"].astype(jnp.bfloat16), "bo": lp["bo"],
            "ln1_g": lp["ln1_g"], "ln1_b": lp["ln1_b"],
            "W1": lp["W1"].astype(jnp.bfloat16), "b1": lp["b1"],
            "W2": lp["W2"].astype(jnp.bfloat16), "b2": lp["b2"],
            "ln2_g": lp["ln2_g"], "ln2_b": lp["ln2_b"],
        })
    return prepped


def ami_bert_forward(params, token_ids, attn_mask, num_heads):
    B, S = token_ids.shape
    H = params["word_emb"].shape[1]
    dh = H // num_heads
    M = B * S

    # Embedding gather in plain JAX; the sum with pos/type embeddings and the LayerNorm
    # are fused in one Pallas kernel (no f32 (M,H) intermediate in HBM).
    word = params["word_emb"][token_ids]                                      # (B, S, H) f32
    pos_type = params["pos_emb"][:S] + params["type_emb"][0][None, :]         # (S, H) f32
    x = embed_layernorm(word, pos_type,
                        params["emb_ln_g"], params["emb_ln_b"]).reshape(M, H)  # (M, H) bf16

    add_mask = ((1.0 - attn_mask.astype(jnp.float32)) * -1e9).reshape(B, 1, S)

    for lp in params["layers"]:
        # Fused Q/K/V projection -> (3, M, H); free reshape to (3, B, S, H).
        qkv = dense_qkv(x, lp["w_qkv"], lp["b_qkv"])
        ctx = attention(qkv.reshape(3, B, S, H), add_mask, num_heads, dh)      # (B, S, H)
        # Wo projection with fused residual + LayerNorm epilogue.
        x = dense(ctx.reshape(M, H), lp["Wo"], lp["bo"],
                  residual=x, ln_gamma=lp["ln1_g"], ln_beta=lp["ln1_b"])
        # FFN: W1 + GELU, then W2 with fused residual + LayerNorm epilogue.
        h = dense(x, lp["W1"], lp["b1"], activation="gelu")
        x = dense(h, lp["W2"], lp["b2"],
                  residual=x, ln_gamma=lp["ln2_g"], ln_beta=lp["ln2_b"])

    return maxpool_seq(x.reshape(B, S, H))  # (B, H) f32 sentence embeddings


# --------------------------------- Driver -----------------------------------

if __name__ == "__main__":
    B, S = 2, 8
    HIDDEN, NUM_HEADS, INTERMEDIATE, NUM_LAYERS = 32, 2, 64, 2
    VOCAB, MAX_POS = 100, 16

    key = jax.random.PRNGKey(0)
    pkey, tkey = jax.random.split(key)

    params = init_params(pkey, VOCAB, MAX_POS, HIDDEN, NUM_HEADS, INTERMEDIATE, NUM_LAYERS)
    params = prepare_params(params, NUM_HEADS)

    token_ids = jax.random.randint(tkey, (B, S), 0, VOCAB, dtype=jnp.int32)
    attn_mask = jnp.array([[1, 1, 1, 1, 1, 1, 1, 1],
                           [1, 1, 1, 1, 1, 0, 0, 0]], dtype=jnp.int32)  # 0 = [PAD]

    out = ami_bert_forward(params, token_ids, attn_mask, NUM_HEADS)
    out = jax.block_until_ready(out)
    assert out.shape == (B, HIDDEN)
    assert bool(jnp.all(jnp.isfinite(out)))
    print("KERNEL_OK")
</pallas_src>

<mosaic_0001>
module attributes {stable_mosaic.version = 11 : i64} {
  func.func @_emb_ln_kernel(%arg0: i32, %arg1: i32, %arg2: memref<1x8x32xf32, #tpu.memory_space<vmem>>, %arg3: memref<8x32xf32, #tpu.memory_space<vmem>>, %arg4: memref<1x32xf32, #tpu.memory_space<vmem>>, %arg5: memref<1x32xf32, #tpu.memory_space<vmem>>, %arg6: memref<1x8x32xbf16, #tpu.memory_space<vmem>>) attributes {dimension_semantics = [#tpu.dimension_semantics<parallel>, #tpu.dimension_semantics<parallel>], iteration_bounds = array<i64: 2, 1>, scalar_prefetch = 0 : i64, scratch_operands = 0 : i64, tpu.core_type = #tpu.core_type<tc>, window_params = [{transform_indices = @transform_0, window_bounds = array<i64: 1, 8, 32>}, {transform_indices = @transform_1, window_bounds = array<i64: 8, 32>}, {pipeline_mode = #tpu.pipeline_mode<synchronous>, transform_indices = @transform_2, window_bounds = array<i64: 1, 32>}, {pipeline_mode = #tpu.pipeline_mode<synchronous>, transform_indices = @transform_3, window_bounds = array<i64: 1, 32>}, {transform_indices = @transform_4, window_bounds = array<i64: 1, 8, 32>}]} {
    %c0 = arith.constant 0 : index
    %c0_0 = arith.constant 0 : index
    %c0_1 = arith.constant 0 : index
    %0 = vector.load %arg2[%c0, %c0_0, %c0_1] : memref<1x8x32xf32, #tpu.memory_space<vmem>>, vector<1x8x32xf32>
    %1 = vector.shape_cast %0 : vector<1x8x32xf32> to vector<8x32xf32>
    %c0_2 = arith.constant 0 : index
    %c0_3 = arith.constant 0 : index
    %2 = vector.load %arg3[%c0_2, %c0_3] : memref<8x32xf32, #tpu.memory_space<vmem>>, vector<8x32xf32>
    %3 = arith.addf %1, %2 : vector<8x32xf32>
    %cst = arith.constant dense<0.000000e+00> : vector<8xf32>
    %4 = vector.multi_reduction <add>, %3, %cst [1] : vector<8x32xf32> to vector<8xf32>
    %5 = vector.shape_cast %4 : vector<8xf32> to vector<8x1xf32>
    %cst_4 = arith.constant 3.200000e+01 : f32
    %6 = vector.broadcast %cst_4 : f32 to vector<8x1xf32>
    %7 = arith.divf %5, %6 : vector<8x1xf32>
    %8 = vector.broadcast %7 : vector<8x1xf32> to vector<8x32xf32>
    %9 = arith.subf %3, %8 : vector<8x32xf32>
    %10 = arith.mulf %9, %9 : vector<8x32xf32>
    %cst_5 = arith.constant dense<0.000000e+00> : vector<8xf32>
    %11 = vector.multi_reduction <add>, %10, %cst_5 [1] : vector<8x32xf32> to vector<8xf32>
    %12 = vector.shape_cast %11 : vector<8xf32> to vector<8x1xf32>
    %cst_6 = arith.constant 3.200000e+01 : f32
    %13 = vector.broadcast %cst_6 : f32 to vector<8x1xf32>
    %14 = arith.divf %12, %13 : vector<8x1xf32>
    %cst_7 = arith.constant 9.99999996E-13 : f32
    %15 = vector.broadcast %cst_7 : f32 to vector<8x1xf32>
    %16 = arith.addf %14, %15 : vector<8x1xf32>
    %17 = math.rsqrt %16 : vector<8x1xf32>
    %18 = vector.broadcast %17 : vector<8x1xf32> to vector<8x32xf32>
    %19 = arith.mulf %9, %18 : vector<8x32xf32>
    %c0_8 = arith.constant 0 : index
    %c0_9 = arith.constant 0 : index
    %20 = vector.load %arg4[%c0_8, %c0_9] : memref<1x32xf32, #tpu.memory_space<vmem>>, vector<1x32xf32>
    %21 = vector.broadcast %20 : vector<1x32xf32> to vector<8x32xf32>
    %22 = arith.mulf %19, %21 : vector<8x32xf32>
    %c0_10 = arith.constant 0 : index
    %c0_11 = arith.constant 0 : index
    %23 = vector.load %arg5[%c0_10, %c0_11] : memref<1x32xf32, #tpu.memory_space<vmem>>, vector<1x32xf32>
    %24 = vector.broadcast %23 : vector<1x32xf32> to vector<8x32xf32>
    %25 = arith.addf %22, %24 : vector<8x32xf32>
    %26 = arith.truncf %25 : vector<8x32xf32> to vector<8x32xbf16>
    %c0_12 = arith.constant 0 : index
    %c0_13 = arith.constant 0 : index
    %c0_14 = arith.constant 0 : index
    %27 = vector.load %arg6[%c0_12, %c0_13, %c0_14] : memref<1x8x32xbf16, #tpu.memory_space<vmem>>, vector<1x8x32xbf16>
    %28 = vector.shape_cast %27 : vector<1x8x32xbf16> to vector<8x32xbf16>
    %29 = vector.shape_cast %26 : vector<8x32xbf16> to vector<1x8x32xbf16>
    tpu.vector_store %arg6[%c0_12, %c0_13, %c0_14], %29 {strides = array<i32>} : memref<1x8x32xbf16, #tpu.memory_space<vmem>>, vector<1x8x32xbf16>,
    return
  }
  func.func @transform_0(%arg0: i32, %arg1: i32) -> (i32, i32, i32) {
    %c0_i32 = arith.constant 0 : i32
    %c0_i32_0 = arith.constant 0 : i32
    return %arg0, %arg1, %c0_i32 : i32, i32, i32
  }
  func.func @transform_1(%arg0: i32, %arg1: i32) -> (i32, i32) {
    %c0_i32 = arith.constant 0 : i32
    %c0_i32_0 = arith.constant 0 : i32
    return %arg1, %c0_i32 : i32, i32
  }
  func.func @transform_2(%arg0: i32, %arg1: i32) -> (i32, i32) {
    %c0_i32 = arith.constant 0 : i32
    %c0_i32_0 = arith.constant 0 : i32
    %c0_i32_1 = arith.constant 0 : i32
    return %c0_i32, %c0_i32_0 : i32, i32
  }
  func.func @transform_3(%arg0: i32, %arg1: i32) -> (i32, i32) {
    %c0_i32 = arith.constant 0 : i32
    %c0_i32_0 = arith.constant 0 : i32
    %c0_i32_1 = arith.constant 0 : i32
    return %c0_i32, %c0_i32_0 : i32, i32
  }
  func.func @transform_4(%arg0: i32, %arg1: i32) -> (i32, i32, i32) {
    %c0_i32 = arith.constant 0 : i32
    %c0_i32_0 = arith.constant 0 : i32
    return %arg0, %arg1, %c0_i32 : i32, i32, i32
  }
}

</mosaic_0001>

<llo_original>
// kernel: tpu_custom_call.1
$region0: #{tpu_custom_call.1}
  #allocation0 [shape = 'u32[]', space=smem, size = 0x4, offset = 0x4, fixed_abs, tag = 'smem constant byte address 0x4 - core index']
  #allocation1 [shape = 'u32[72,128]{1,0:T(1,128)}', space=vmem, size = 0x9000, scoped, tag = 'internal scratch']
  %s0 = inlined_call_operand.hbm [shape: f32[2,8,32], index: 0, kind: input, shape index: {}]
  %s1 = inlined_call_operand.hbm [shape: f32[8,32], index: 1, kind: input, shape index: {}]
  %s2 = inlined_call_operand.vmem [shape: f32[1,32], index: 2, kind: input, shape index: {}]
  %s3 = inlined_call_operand.vmem [shape: f32[1,32], index: 3, kind: input, shape index: {}]
  %s4 = inlined_call_operand.hbm [shape: bf16[2,8,32], index: 4, kind: output, shape index: {}]
  %s5 = sld [smem:[#allocation0]]
  $region57: #{tpu_custom_call.1} parent=0
    _
  %s7 = ssub.s32 1, %s5
  %s8 = scalar_select 0, %s7, %s5
  $region1: #{tpu_custom_call.1} parent=0
    #allocation2 [shape = 'u8[8192]{0}', space=vmem, size = 0x2000, scoped, tag = 'input window, operand 0']
    #allocation3 [shape = 's32[2]{0}', space=sflag, size = 0x8, scoped, tag = 'scoped memory for tpu_custom_call.1']
    #allocation4 [shape = 's32[2]{0}', space=sflag, size = 0x8, scoped, tag = 'scoped memory for tpu_custom_call.1']
    #allocation5 [shape = 'u8[4096]{0}', space=vmem, size = 0x1000, scoped, tag = 'input window, operand 1, single buffered']
    #allocation6 [shape = 's32[1]{0}', space=sflag, size = 0x4, scoped, tag = 'scoped memory for tpu_custom_call.1']
    #allocation7 [shape = 'u8[4096]{0}', space=vmem, size = 0x1000, scoped, tag = 'output window, operand 0']
    %9 = vsyncpa [#allocation3], 0
    %s10 = scalar_lea.sflag [#allocation3], 1
    %11 = vsyncpa %s10, 0
    %12 = vsyncpa [#allocation6], 0
    %13 = vsyncpa [#allocation4], 0
    %s14 = scalar_lea.sflag [#allocation4], 1
    %15 = vsyncpa %s14, 0
    loop: start=0, step=1, limit=4
    $region2: #{tpu_custom_call.1} parent=1 // loop_pre_header
      _
    $region3: #{tpu_custom_call.1} parent=1 // loop_header
      %s17 = sphi 0, %s21
      %p18 = scmp.ge.s32.totalorder %s17, 4
      %s24 = sphi 0, %s36
      %s25 = sphi 0, %s32
      %s26 = sphi 0, %s24
      %s27 = sphi 0, %s25
      %s28 = sphi 0, %s26
      %s29 = sphi 0, %s27
      %s41 = sphi 0, %s43
      %s44 = sphi 0, %s41
      %s45 = sphi 0, %s44
      %s61 = sphi 0, %s45
      %s67 = sphi 0, %s69
      %s70 = sphi 0, %s67
      %s71 = sphi 0, %s70
      %s87 = sphi 0, %s71
      %s91 = sphi 0, %s91
      %s93 = sphi 0, %s91
      %s94 = sphi 0, %s93
      %s108 = sphi 0, %s94
      %s112 = sphi 0, %s112
      %s114 = sphi 0, %s112
      %s115 = sphi 0, %s114
      %s129 = sphi 0, %s115
      %s137 = sphi 0, %s139
      %s140 = sphi 0, %s137
      %s141 = sphi 0, %s140
      %s157 = sphi 0, %s141
    $region4: #{tpu_custom_call.1} parent=1 // loop_header_branch
      %20 = sbr.rel (%p18) target = $region8
    $region5: #{tpu_custom_call.1} parent=1 // loop_body
      %s22 = ssub.s32 %s17, 1
      %s23 = ssub.s32 %s17, 2
      %s30 = sadd.s32 1, %s25
      %p31 = scmp.ge.s32.totalorder %s30, 1
      %s32 = scalar_select %p31, 0, %s30
      %s33 = sadd.s32 1, %s24
      %s34 = scalar_select %p31, %s33, %s24
      %p35 = scmp.ge.s32.totalorder %s34, 2
      %s36 = scalar_select %p35, 0, %s34
      %s37 = ssub.s32 %s24, %s36
      %s38 = ssub.s32 %s25, %s32
      %s39 = sor.u32 %s37, %s38
      %p40 = scmp.eq.s32.totalorder %s39, 0
      %s42 = sadd.s32 %s41, 1
      %s43 = scalar_select %p40, %s41, %s42
      %p46 = pneg %p40
      %p47 = scmp.eq.s32.totalorder %s17, 1
      %p48 = por %p46, %p47
      %p49 = scmp.ne.s32.totalorder %s41, %s44
      %p50 = scmp.eq.s32.totalorder %s17, 0
      %p51 = por %p49, %p50
      %p52 = scmp.ne.s32.totalorder %s41, %s44
      %p53 = scmp.eq.s32.totalorder %s22, 1
      %p54 = por %p52, %p53
      %p55 = scmp.ne.s32.totalorder %s44, %s45
      %p56 = scmp.eq.s32.totalorder %s22, 0
      %p57 = por %p55, %p56
      %p58 = scmp.ne.s32.totalorder %s44, %s45
      %p59 = scmp.eq.s32.totalorder %s23, 1
      %p60 = por %p58, %p59
      %p62 = scmp.ne.s32.totalorder %s45, %s61
      %p63 = scmp.eq.s32.totalorder %s23, 0
      %p64 = por %p62, %p63
      %s65 = ssub.s32 %s25, %s32
      %p66 = scmp.eq.s32.totalorder %s65, 0
      %s68 = sadd.s32 %s67, 1
      %s69 = scalar_select %p66, %s67, %s68
      %p72 = pneg %p66
      %p73 = scmp.eq.s32.totalorder %s17, 1
      %p74 = por %p72, %p73
      %p75 = scmp.ne.s32.totalorder %s67, %s70
      %p76 = scmp.eq.s32.totalorder %s17, 0
      %p77 = por %p75, %p76
      %p78 = scmp.ne.s32.totalorder %s67, %s70
      %p79 = scmp.eq.s32.totalorder %s22, 1
      %p80 = por %p78, %p79
      %p81 = scmp.ne.s32.totalorder %s70, %s71
      %p82 = scmp.eq.s32.totalorder %s22, 0
      %p83 = por %p81, %p82
      %p84 = scmp.ne.s32.totalorder %s70, %s71
      %p85 = scmp.eq.s32.totalorder %s23, 1
      %p86 = por %p84, %p85
      %p88 = scmp.ne.s32.totalorder %s71, %s87
      %p89 = scmp.eq.s32.totalorder %s23, 0
      %p90 = por %p88, %p89
      %s92 = sadd.s32 %s91, 1
      %p95 = scmp.eq.s32.totalorder %s17, 1
      %p96 = scmp.ne.s32.totalorder %s91, %s93
      %p97 = scmp.eq.s32.totalorder %s17, 0
      %p98 = por %p96, %p97
      %p99 = scmp.ne.s32.totalorder %s91, %s93
      %p100 = scmp.eq.s32.totalorder %s22, 1
      %p101 = por %p99, %p100
      %p102 = scmp.ne.s32.totalorder %s93, %s94
      %p103 = scmp.eq.s32.totalorder %s22, 0
      %p104 = por %p102, %p103
      %p105 = scmp.ne.s32.totalorder %s93, %s94
      %p106 = scmp.eq.s32.totalorder %s23, 1
      %p107 = por %p105, %p106
      %p109 = scmp.ne.s32.totalorder %s94, %s108
      %p110 = scmp.eq.s32.totalorder %s23, 0
      %p111 = por %p109, %p110
      %s113 = sadd.s32 %s112, 1
      %p116 = scmp.eq.s32.totalorder %s17, 1
      %p117 = scmp.ne.s32.totalorder %s112, %s114
      %p118 = scmp.eq.s32.totalorder %s17, 0
      %p119 = por %p117, %p118
      %p120 = scmp.ne.s32.totalorder %s112, %s114
      %p121 = scmp.eq.s32.totalorder %s22, 1
      %p122 = por %p120, %p121
      %p123 = scmp.ne.s32.totalorder %s114, %s115
      %p124 = scmp.eq.s32.totalorder %s22, 0
      %p125 = por %p123, %p124
      %p126 = scmp.ne.s32.totalorder %s114, %s115
      %p127 = scmp.eq.s32.totalorder %s23, 1
      %p128 = por %p126, %p127
      %p130 = scmp.ne.s32.totalorder %s115, %s129
      %p131 = scmp.eq.s32.totalorder %s23, 0
      %p132 = por %p130, %p131
      %s133 = ssub.s32 %s24, %s36
      %s134 = ssub.s32 %s25, %s32
      %s135 = sor.u32 %s133, %s134
      %p136 = scmp.eq.s32.totalorder %s135, 0
      %s138 = sadd.s32 %s137, 1
      %s139 = scalar_select %p136, %s137, %s138
      %p142 = pneg %p136
      %p143 = scmp.eq.s32.totalorder %s17, 1
      %p144 = por %p142, %p143
      %p145 = scmp.ne.s32.totalorder %s137, %s140
      %p146 = scmp.eq.s32.totalorder %s17, 0
      %p147 = por %p145, %p146
      %p148 = scmp.ne.s32.totalorder %s137, %s140
      %p149 = scmp.eq.s32.totalorder %s22, 1
      %p150 = por %p148, %p149
      %p151 = scmp.ne.s32.totalorder %s140, %s141
      %p152 = scmp.eq.s32.totalorder %s22, 0
      %p153 = por %p151, %p152
      %p154 = scmp.ne.s32.totalorder %s140, %s141
      %p155 = scmp.eq.s32.totalorder %s23, 1
      %p156 = por %p154, %p155
      %p158 = scmp.ne.s32.totalorder %s141, %s157
      %p159 = scmp.eq.s32.totalorder %s23, 0
      %p160 = por %p158, %p159
      %p161 = scmp.le.s32.totalorder 1, %s17
      %p162 = scmp.lt.s32.totalorder %s17, 3
      %p163 = pnand %p161, %p162
      %p164 = pneg %p163
      // Predicated region
      $region9: #{tpu_custom_call.1} parent=5 // pred_check
        _
      $region10: #{tpu_custom_call.1} parent=5 // pred_check_branch
        %166 = sbr.rel (%p163) target = $region12
      $region11: #{tpu_custom_call.1} parent=5 // pred_region
        %s167 = ssub.s32 %s17, 1
        // Predicated region
        $region13: #{tpu_custom_call.1} parent=11 // pred_check
          %p168 = pneg %p83
        $region14: #{tpu_custom_call.1} parent=11 // pred_check_branch
          %170 = sbr.rel (%p168) target = $region16
        $region15: #{tpu_custom_call.1} parent=11 // pred_region
          %172 = vsyncadd [#allocation6], 0
          %s173 = smul.addr %s27, 8
          %s174 = scalar_lea.hbm %s1, %s173
          %s176 = sshll.u32 %s174, 4
          %s177 = int_to_ptr.hbm [resolvable:$true] %s176
          %s178 = sshll.u32 [#allocation5], 4
          %s179 = int_to_ptr.vmem [resolvable:$true] %s178
          %181 = dma.hbm_to_vmem [thread:$0]  %s177, 128, %s179, [#allocation6]
        $region16: #{tpu_custom_call.1} parent=11 // pred_fallthru
          _
        // Predicated region
        $region17: #{tpu_custom_call.1} parent=11 // pred_check
          %p182 = pneg %p104
        $region18: #{tpu_custom_call.1} parent=11 // pred_check_branch
          %184 = sbr.rel (%p182) target = $region20
        $region19: #{tpu_custom_call.1} parent=11 // pred_region
          _
        $region20: #{tpu_custom_call.1} parent=11 // pred_fallthru
          _
        // Predicated region
        $region21: #{tpu_custom_call.1} parent=11 // pred_check
          %p185 = pneg %p125
        $region22: #{tpu_custom_call.1} parent=11 // pred_check_branch
          %187 = sbr.rel (%p185) target = $region24
        $region23: #{tpu_custom_call.1} parent=11 // pred_region
          _
        $region24: #{tpu_custom_call.1} parent=11 // pred_fallthru
          _
      $region12: #{tpu_custom_call.1} parent=5 // pred_fallthru
        _
      %p188 = scmp.lt.s32.totalorder %s17, 2
      // Predicated region
      $region25: #{tpu_custom_call.1} parent=5 // pred_check
        %p189 = pneg %p188
      $region26: #{tpu_custom_call.1} parent=5 // pred_check_branch
        %191 = sbr.rel (%p189) target = $region28
      $region27: #{tpu_custom_call.1} parent=5 // pred_region
        // Predicated region
        $region29: #{tpu_custom_call.1} parent=27 // pred_check
          %p192 = pneg %p51
        $region30: #{tpu_custom_call.1} parent=27 // pred_check_branch
          %194 = sbr.rel (%p192) target = $region32
        $region31: #{tpu_custom_call.1} parent=27 // pred_region
          %s195 = sand.u32 %s41, 1
          %s196 = scalar_lea.sflag [#allocation3], %s195
          %s197 = sand.u32 %s41, 1
          %s198 = smul.addr %s197, 8
          %s199 = scalar_lea.vmem [#allocation2], %s198
          %201 = vsyncadd %s196, 0
          %s202 = sadd.s32 %s25, %s24
          %s203 = smul.addr %s202, 8
          %s204 = scalar_lea.hbm %s0, %s203
          %s206 = sshll.u32 %s204, 4
          %s207 = int_to_ptr.hbm [resolvable:$true] %s206
          %s208 = sshll.u32 %s199, 4
          %s209 = int_to_ptr.vmem [resolvable:$true] %s208
          %211 = dma.hbm_to_vmem [thread:$0]  %s207, 128, %s209, %s196
        $region32: #{tpu_custom_call.1} parent=27 // pred_fallthru
          _
      $region28: #{tpu_custom_call.1} parent=5 // pred_fallthru
        _
      %p212 = scmp.le.s32.totalorder 1, %s17
      %p213 = scmp.lt.s32.totalorder %s17, 3
      %p214 = pnand %p212, %p213
      %p215 = pneg %p214
      // Predicated region
      $region33: #{tpu_custom_call.1} parent=5 // pred_check
        _
      $region34: #{tpu_custom_call.1} parent=5 // pred_check_branch
        %217 = sbr.rel (%p214) target = $region36
      $region35: #{tpu_custom_call.1} parent=5 // pred_region
        %s218 = ssub.s32 %s17, 1
        %s219 = sand.u32 %s44, 1
        %s220 = scalar_lea.sflag [#allocation3], %s219
        %s221 = sand.u32 %s44, 1
        %s222 = smul.addr %s221, 8
        %s223 = scalar_lea.vmem [#allocation2], %s222
        // Predicated region
        $region37: #{tpu_custom_call.1} parent=35 // pred_check
          %p224 = pneg %p57
        $region38: #{tpu_custom_call.1} parent=35 // pred_check_branch
          %226 = sbr.rel (%p224) target = $region40
        $region39: #{tpu_custom_call.1} parent=35 // pred_region
          %228 = dma.done %s220, 128
        $region40: #{tpu_custom_call.1} parent=35 // pred_fallthru
          _
        // Predicated region
        $region41: #{tpu_custom_call.1} parent=35 // pred_check
          %p229 = pneg %p83
        $region42: #{tpu_custom_call.1} parent=35 // pred_check_branch
          %231 = sbr.rel (%p229) target = $region44
        $region43: #{tpu_custom_call.1} parent=35 // pred_region
          %233 = dma.done [#allocation6], 128
        $region44: #{tpu_custom_call.1} parent=35 // pred_fallthru
          _
        %s234 = sand.u32 %s44, 1
        %s235 = scalar_lea.sflag [#allocation3], %s234
        %s236 = sand.u32 %s44, 1
        %s237 = smul.addr %s236, 8
        %s238 = scalar_lea.vmem [#allocation2], %s237
        %p239 = pneg %p57
        %p240 = pneg %p54
        %p241 = pneg %p83
        %p242 = pneg %p80
        %p243 = pneg %p104
        %p244 = pneg %p101
        %p245 = pneg %p125
        %p246 = pneg %p122
        %p247 = pneg %p153
        %p248 = pneg %p150
        %s249 = sand.u32 %s140, 1
        %s250 = scalar_lea.sflag [#allocation4], %s249
        %s251 = sand.u32 %s140, 1
        %s252 = smul.addr %s251, 4
        %s253 = scalar_lea.vmem [#allocation7], %s252
        %v254 = vld [vmem:[%s223] sm:$0xff]
        %v255 = vld [vmem:[#allocation5] sm:$0xff]
        %v256 = vadd.f32 %v254, %v255
        %vm257 = vcmask 261120
        %v258 = vsel %vm257, %v256, 0.0
        %259 = vadd.xlane.f32.xlu0 %v258
        %v260 = vpop.xlane.xlu0 %259
        %v261 = vrcp.pop 32.0
        %v262 = vmul.f32 32.0, %v261
        %v263 = vsub.f32 1.0, %v262
        %v264 = vmul.f32 %v261, %v263
        %v265 = vadd.f32 %v261, %v264
        %vm266 = vweird.f32 %v261
        %v267 = vsel %vm266, %v261, %v265
        %v268 = vmul.f32 %v260, %v267
        %v269 = vsub.f32 %v256, %v268
        %v270 = vmul.f32 %v269, %v269
        %v271 = vsel %vm257, %v270, 0.0
        %272 = vadd.xlane.f32.xlu0 %v271
        %v273 = vpop.xlane.xlu0 %272
        %v274 = vmul.f32 %v273, %v267
        %v275 = vadd.f32 %v274, 1e-12
        %v276 = vrsqrt.pop %v275
        %v277 = vmul.f32 %v276, %v275
        %v278 = vmul.f32 %v277, %v276
        %v279 = vmul.f32 0.5, %v278
        %v280 = vsub.f32 1.5, %v279
        %v281 = vmul.f32 %v276, %v280
        %vm282 = vweird.f32 %v275
        %vm283 = vweird.f32 %v276
        %vm284 = vmor %vm282, %vm283
        %v285 = vsel %vm284, %v276, %v281
        %v286 = vmul.f32 %v269, %v285
        %v287 = vld [vmem:[%s2] sm:$0x1]
        %v289 = vperm.slane %v287, 0
        %v291 = vmul.f32 %v286, %v289
        %v292 = vld [vmem:[%s3] sm:$0x1]
        %v294 = vperm.slane %v292, 0
        %v296 = vadd.f32 %v291, %v294
        %v297 = vpack.c.bf16 %v296, %v296
        %vm298 = vcmask 257024
        %299 = vst.msk [vmem:[%s253] sm:$0xf] %vm298, %v297
        %s300 = sand.u32 %s140, 1
        %s301 = scalar_lea.sflag [#allocation4], %s300
        %s302 = sand.u32 %s140, 1
        %s303 = smul.addr %s302, 4
        %s304 = scalar_lea.vmem [#allocation7], %s303
        // Predicated region
        $region45: #{tpu_custom_call.1} parent=35 // pred_check
          %p305 = pneg %p150
        $region46: #{tpu_custom_call.1} parent=35 // pred_check_branch
          %307 = sbr.rel (%p305) target = $region48
        $region47: #{tpu_custom_call.1} parent=35 // pred_region
          %309 = vsyncadd %s301, 0
          %s310 = sadd.s32 %s27, %s26
          %s311 = smul.addr %s310, 4
          %s312 = scalar_lea.hbm %s4, %s311
          %s314 = sshll.u32 %s304, 4
          %s315 = int_to_ptr.vmem [resolvable:$true] %s314
          %s316 = sshll.u32 %s312, 4
          %s317 = int_to_ptr.hbm [resolvable:$true] %s316
          %319 = dma.vmem_to_hbm [thread:$0]  %s315, 64, %s317, %s301
        $region48: #{tpu_custom_call.1} parent=35 // pred_fallthru
          _
      $region36: #{tpu_custom_call.1} parent=5 // pred_fallthru
        _
      %p320 = scmp.le.s32.totalorder 2, %s17
      // Predicated region
      $region49: #{tpu_custom_call.1} parent=5 // pred_check
        %p321 = pneg %p320
      $region50: #{tpu_custom_call.1} parent=5 // pred_check_branch
        %323 = sbr.rel (%p321) target = $region52
      $region51: #{tpu_custom_call.1} parent=5 // pred_region
        %s324 = ssub.s32 %s17, 2
        // Predicated region
        $region53: #{tpu_custom_call.1} parent=51 // pred_check
          %p325 = pneg %p156
        $region54: #{tpu_custom_call.1} parent=51 // pred_check_branch
          %327 = sbr.rel (%p325) target = $region56
        $region55: #{tpu_custom_call.1} parent=51 // pred_region
          %s328 = sand.u32 %s141, 1
          %s329 = scalar_lea.sflag [#allocation4], %s328
          %s330 = sand.u32 %s141, 1
          %s331 = smul.addr %s330, 4
          %s332 = scalar_lea.vmem [#allocation7], %s331
          %334 = dma.done %s329, 64
        $region56: #{tpu_custom_call.1} parent=51 // pred_fallthru
          _
      $region52: #{tpu_custom_call.1} parent=5 // pred_fallthru
        _
    $region6: #{tpu_custom_call.1} parent=1 // loop_footer
      %s21 = sadd.s32 1, %s17
    $region7: #{tpu_custom_call.1} parent=1 // loop_footer_branch
      %16 = sbr.rel target = $region3
    $region8: #{tpu_custom_call.1} parent=1 // loop_exit
      _
    %335 = vsyncpa [#allocation3], 1
    %s336 = scalar_lea.sflag [#allocation3], 1
    %337 = vsyncpa %s336, 1
    %338 = vsyncpa [#allocation6], 1
    %339 = vsyncpa [#allocation4], 1
    %s340 = scalar_lea.sflag [#allocation4], 1
    %341 = vsyncpa %s340, 1

</llo_original>
